<compile_context>
chip_gen: v5e
topology: v5e:2x2
jax: 0.10.0
libtpu: 0.0.40
codegen_flags: <defaults>
</compile_context>

<pallas_src>
import jax
import jax.numpy as jnp
from jax.experimental import pallas as pl
from jax.experimental.pallas import tpu as pltpu

IN_FEATURES = 7


def neuron_kernel(w_ref, b_ref, x_ref, o_ref):
    # w_ref: (7,) f32 in SMEM,  b_ref: (1,) f32 in SMEM
    # x_ref: (8, TILE) f32 in VMEM (feature-major, padded to 8 sublanes)
    # o_ref: (1, TILE) f32 in VMEM (lane-dense output)
    z = x_ref[0:1, :] * w_ref[0]
    for k in range(1, IN_FEATURES):          # short fixed loop -> unrolled FMAs
        z = z + x_ref[k:k + 1, :] * w_ref[k]
    z = z + b_ref[0]
    o_ref[...] = jax.nn.sigmoid(z).astype(o_ref.dtype)


def neuron_forward(x, w, b, *, tile=2048):
    """x: (N, 7) f32, w: (1, 7) f32, b: (1,) f32 -> (N, 1) f32."""
    n, k = x.shape
    assert k == IN_FEATURES

    # ---- wrapper-side layout plumbing (plain JAX glue) ----
    n_pad = pl.cdiv(n, tile) * tile                      # N not divisible by TILE: pad
    xt = jnp.zeros((8, n_pad), jnp.float32).at[:k, :n].set(x.T)  # feature-major, 8 sublanes
    w_flat = w.reshape(-1).astype(jnp.float32)           # (7,) for SMEM
    b_flat = b.reshape(-1).astype(jnp.float32)           # (1,) for SMEM

    out = pl.pallas_call(
        neuron_kernel,
        out_shape=jax.ShapeDtypeStruct((1, n_pad), jnp.float32),
        grid=(n_pad // tile,),
        in_specs=[
            pl.BlockSpec(memory_space=pltpu.MemorySpace.SMEM),   # w (7 scalars)
            pl.BlockSpec(memory_space=pltpu.MemorySpace.SMEM),   # b (1 scalar)
            pl.BlockSpec((8, tile), lambda i: (0, i)),           # x tile, lane-dense
        ],
        out_specs=pl.BlockSpec((1, tile), lambda i: (0, i)),     # lane-dense store
        compiler_params=pltpu.CompilerParams(
            dimension_semantics=("parallel",)),                  # shard over TCs (v7x)
    )(w_flat, b_flat, xt)

    # strip padding, back to PyTorch-style (N, 1)
    return out[0, :n].reshape(n, 1)


if __name__ == "__main__":
    key = jax.random.PRNGKey(0)
    kx, kw, kb = jax.random.split(key, 3)

    batch = 8
    in_features = IN_FEATURES

    # Deterministic parameter init mimicking nn.Linear default:
    # U(-1/sqrt(in), 1/sqrt(in))
    bound = 1.0 / jnp.sqrt(jnp.float32(in_features))
    w = jax.random.uniform(kw, (1, in_features), jnp.float32, -bound, bound)
    b = jax.random.uniform(kb, (1,), jnp.float32, -bound, bound)

    x = jax.random.normal(kx, (batch, in_features), jnp.float32)

    out = neuron_forward(x, w, b)
    jax.block_until_ready(out)

    # Pure-JAX reference check
    ref = jax.nn.sigmoid(x @ w.T + b)
    assert out.shape == (batch, 1)
    assert jnp.allclose(out, ref, atol=1e-5), "mismatch vs reference"

    print("KERNEL_OK")
</pallas_src>

<mosaic_0001>
module attributes {stable_mosaic.version = 11 : i64} {
  func.func @neuron_kernel(%arg0: i32, %arg1: memref<7xf32, #tpu.memory_space<smem>>, %arg2: memref<1xf32, #tpu.memory_space<smem>>, %arg3: memref<8x2048xf32, #tpu.memory_space<vmem>>, %arg4: memref<1x2048xf32, #tpu.memory_space<vmem>>) attributes {dimension_semantics = [#tpu.dimension_semantics<parallel>], iteration_bounds = array<i64: 1>, scalar_prefetch = 0 : i64, scratch_operands = 0 : i64, tpu.core_type = #tpu.core_type<tc>, window_params = [{transform_indices = @transform_0, window_bounds = array<i64: 7>}, {transform_indices = @transform_1, window_bounds = array<i64: 1>}, {transform_indices = @transform_2, window_bounds = array<i64: 8, 2048>}, {transform_indices = @transform_3, window_bounds = array<i64: 1, 2048>}]} {
    %c0 = arith.constant 0 : index
    %c0_0 = arith.constant 0 : index
    %0 = vector.load %arg3[%c0, %c0_0] : memref<8x2048xf32, #tpu.memory_space<vmem>>, vector<1x2048xf32>
    %c0_1 = arith.constant 0 : index
    %1 = memref.load %arg1[%c0_1] : memref<7xf32, #tpu.memory_space<smem>>
    %2 = vector.broadcast %1 : f32 to vector<1x2048xf32>
    %3 = arith.mulf %0, %2 : vector<1x2048xf32>
    %c1 = arith.constant 1 : index
    %c0_2 = arith.constant 0 : index
    %4 = vector.load %arg3[%c1, %c0_2] : memref<8x2048xf32, #tpu.memory_space<vmem>>, vector<1x2048xf32>
    %c1_3 = arith.constant 1 : index
    %5 = memref.load %arg1[%c1_3] : memref<7xf32, #tpu.memory_space<smem>>
    %6 = vector.broadcast %5 : f32 to vector<1x2048xf32>
    %7 = arith.mulf %4, %6 : vector<1x2048xf32>
    %8 = arith.addf %3, %7 : vector<1x2048xf32>
    %c2 = arith.constant 2 : index
    %c0_4 = arith.constant 0 : index
    %9 = vector.load %arg3[%c2, %c0_4] : memref<8x2048xf32, #tpu.memory_space<vmem>>, vector<1x2048xf32>
    %c2_5 = arith.constant 2 : index
    %10 = memref.load %arg1[%c2_5] : memref<7xf32, #tpu.memory_space<smem>>
    %11 = vector.broadcast %10 : f32 to vector<1x2048xf32>
    %12 = arith.mulf %9, %11 : vector<1x2048xf32>
    %13 = arith.addf %8, %12 : vector<1x2048xf32>
    %c3 = arith.constant 3 : index
    %c0_6 = arith.constant 0 : index
    %14 = vector.load %arg3[%c3, %c0_6] : memref<8x2048xf32, #tpu.memory_space<vmem>>, vector<1x2048xf32>
    %c3_7 = arith.constant 3 : index
    %15 = memref.load %arg1[%c3_7] : memref<7xf32, #tpu.memory_space<smem>>
    %16 = vector.broadcast %15 : f32 to vector<1x2048xf32>
    %17 = arith.mulf %14, %16 : vector<1x2048xf32>
    %18 = arith.addf %13, %17 : vector<1x2048xf32>
    %c4 = arith.constant 4 : index
    %c0_8 = arith.constant 0 : index
    %19 = vector.load %arg3[%c4, %c0_8] : memref<8x2048xf32, #tpu.memory_space<vmem>>, vector<1x2048xf32>
    %c4_9 = arith.constant 4 : index
    %20 = memref.load %arg1[%c4_9] : memref<7xf32, #tpu.memory_space<smem>>
    %21 = vector.broadcast %20 : f32 to vector<1x2048xf32>
    %22 = arith.mulf %19, %21 : vector<1x2048xf32>
    %23 = arith.addf %18, %22 : vector<1x2048xf32>
    %c5 = arith.constant 5 : index
    %c0_10 = arith.constant 0 : index
    %24 = vector.load %arg3[%c5, %c0_10] : memref<8x2048xf32, #tpu.memory_space<vmem>>, vector<1x2048xf32>
    %c5_11 = arith.constant 5 : index
    %25 = memref.load %arg1[%c5_11] : memref<7xf32, #tpu.memory_space<smem>>
    %26 = vector.broadcast %25 : f32 to vector<1x2048xf32>
    %27 = arith.mulf %24, %26 : vector<1x2048xf32>
    %28 = arith.addf %23, %27 : vector<1x2048xf32>
    %c6 = arith.constant 6 : index
    %c0_12 = arith.constant 0 : index
    %29 = vector.load %arg3[%c6, %c0_12] : memref<8x2048xf32, #tpu.memory_space<vmem>>, vector<1x2048xf32>
    %c6_13 = arith.constant 6 : index
    %30 = memref.load %arg1[%c6_13] : memref<7xf32, #tpu.memory_space<smem>>
    %31 = vector.broadcast %30 : f32 to vector<1x2048xf32>
    %32 = arith.mulf %29, %31 : vector<1x2048xf32>
    %33 = arith.addf %28, %32 : vector<1x2048xf32>
    %c0_14 = arith.constant 0 : index
    %34 = memref.load %arg2[%c0_14] : memref<1xf32, #tpu.memory_space<smem>>
    %35 = vector.broadcast %34 : f32 to vector<1x2048xf32>
    %36 = arith.addf %33, %35 : vector<1x2048xf32>
    %37 = arith.negf %36 : vector<1x2048xf32>
    %38 = math.exp %37 : vector<1x2048xf32>
    %cst = arith.constant 1.000000e+00 : f32
    %39 = vector.broadcast %cst : f32 to vector<1x2048xf32>
    %40 = arith.addf %39, %38 : vector<1x2048xf32>
    %41 = arith.divf %39, %40 : vector<1x2048xf32>
    %c0_15 = arith.constant 0 : index
    %c0_16 = arith.constant 0 : index
    %42 = vector.load %arg4[%c0_15, %c0_16] : memref<1x2048xf32, #tpu.memory_space<vmem>>, vector<1x2048xf32>
    tpu.vector_store %arg4[%c0_15, %c0_16], %41 {strides = array<i32>} : memref<1x2048xf32, #tpu.memory_space<vmem>>, vector<1x2048xf32>,
    return
  }
  func.func @transform_0(%arg0: i32) -> i32 {
    %c0_i32 = arith.constant 0 : i32
    %c0_i32_0 = arith.constant 0 : i32
    return %c0_i32 : i32
  }
  func.func @transform_1(%arg0: i32) -> i32 {
    %c0_i32 = arith.constant 0 : i32
    %c0_i32_0 = arith.constant 0 : i32
    return %c0_i32 : i32
  }
  func.func @transform_2(%arg0: i32) -> (i32, i32) {
    %c0_i32 = arith.constant 0 : i32
    %c0_i32_0 = arith.constant 0 : i32
    return %c0_i32, %arg0 : i32, i32
  }
  func.func @transform_3(%arg0: i32) -> (i32, i32) {
    %c0_i32 = arith.constant 0 : i32
    %c0_i32_0 = arith.constant 0 : i32
    return %c0_i32, %arg0 : i32, i32
  }
}

</mosaic_0001>

<llo_original>
// kernel: tpu_custom_call.1
$region0: #{tpu_custom_call.1}
  #allocation0 [shape = 'u32[]', space=smem, size = 0x4, offset = 0x4, fixed_abs, tag = 'smem constant byte address 0x4 - core index']
  #allocation1 [shape = 'u32[72,128]{1,0:T(1,128)}', space=vmem, size = 0x9000, scoped, tag = 'internal scratch']
  #allocation2 [shape = 'f32[1]{0:T(128)S(6)}', space=smem, size = 0x200, scoped, tag = 'scoped memory for tpu_custom_call.1']
  %s0 = inlined_call_operand.vmem [shape: f32[7], index: 0, kind: input, shape index: {}]
  %s1 = inlined_call_operand.<no memory space> [shape: f32[1], index: 1, kind: input, shape index: {}]
  %s2 = inlined_call_operand.hbm [shape: f32[8,2048], index: 2, kind: input, shape index: {}]
  %s3 = inlined_call_operand.hbm [shape: f32[1,2048], index: 3, kind: output, shape index: {}]
  %s4 = sld [smem:[#allocation0]]
  $region30: #{tpu_custom_call.1} parent=0
    _
  %s6 = ssub.s32 1, %s4
  %s7 = scalar_select 0, %s6, %s4
  %8 = sst [smem:[#allocation2]] %s1
  $region1: #{tpu_custom_call.1} parent=0
    #allocation3 [shape = 'u8[512]{0}', space=smem, size = 0x200, scoped, tag = 'input window, operand 0, single buffered']
    #allocation4 [shape = 's32[1]{0}', space=sflag, size = 0x4, scoped, tag = 'scoped memory for tpu_custom_call.1']
    #allocation5 [shape = 's32[1]{0}', space=sflag, size = 0x4, scoped, tag = 'scoped memory for tpu_custom_call.1']
    #allocation6 [shape = 's32[1]{0}', space=sflag, size = 0x4, scoped, tag = 'scoped memory for tpu_custom_call.1']
    #allocation7 [shape = 'u8[65536]{0}', space=vmem, size = 0x10000, scoped, tag = 'input window, operand 2, single buffered']
    #allocation8 [shape = 'u8[8192]{0}', space=vmem, size = 0x2000, scoped, tag = 'output window, operand 0, single buffered']
    %9 = vsyncpa [#allocation6], 0
    %10 = vsyncpa [#allocation4], 0
    %11 = vsyncpa [#allocation5], 0
    // Predicated region
    $region2: #{tpu_custom_call.1} parent=1 // pred_check
      _
    $region3: #{tpu_custom_call.1} parent=1 // pred_check_branch
      %13 = sbr.rel (0) target = $region5
    $region4: #{tpu_custom_call.1} parent=1 // pred_region
      %15 = vsyncadd [#allocation6], 0
      %s17 = sshll.u32 %s0, 4
      %s18 = int_to_ptr.vmem [resolvable:$true] %s17
      %20 = dma.vmem_to_smem %s18, 16, [#allocation3], [#allocation6]
    $region5: #{tpu_custom_call.1} parent=1 // pred_fallthru
      _
    // Predicated region
    $region6: #{tpu_custom_call.1} parent=1 // pred_check
      _
    $region7: #{tpu_custom_call.1} parent=1 // pred_check_branch
      %22 = sbr.rel (0) target = $region9
    $region8: #{tpu_custom_call.1} parent=1 // pred_region
      _
    $region9: #{tpu_custom_call.1} parent=1 // pred_fallthru
      _
    // Predicated region
    $region10: #{tpu_custom_call.1} parent=1 // pred_check
      _
    $region11: #{tpu_custom_call.1} parent=1 // pred_check_branch
      %24 = sbr.rel (0) target = $region13
    $region12: #{tpu_custom_call.1} parent=1 // pred_region
      %26 = vsyncadd [#allocation4], 0
      %s28 = sshll.u32 %s2, 4
      %s29 = int_to_ptr.hbm [resolvable:$true] %s28
      %s30 = sshll.u32 [#allocation7], 4
      %s31 = int_to_ptr.vmem [resolvable:$true] %s30
      %33 = dma.hbm_to_vmem [thread:$0]  %s29, 2048, %s31, [#allocation4]
    $region13: #{tpu_custom_call.1} parent=1 // pred_fallthru
      _
    // Predicated region
    $region14: #{tpu_custom_call.1} parent=1 // pred_check
      _
    $region15: #{tpu_custom_call.1} parent=1 // pred_check_branch
      %35 = sbr.rel (0) target = $region17
    $region16: #{tpu_custom_call.1} parent=1 // pred_region
      %37 = dma.done [#allocation6], 16
    $region17: #{tpu_custom_call.1} parent=1 // pred_fallthru
      _
    // Predicated region
    $region18: #{tpu_custom_call.1} parent=1 // pred_check
      _
    $region19: #{tpu_custom_call.1} parent=1 // pred_check_branch
      %39 = sbr.rel (0) target = $region21
    $region20: #{tpu_custom_call.1} parent=1 // pred_region
      %41 = dma.done [#allocation4], 2048
    $region21: #{tpu_custom_call.1} parent=1 // pred_fallthru
      _
    %42 = sfence
    %v43 = vld [vmem:[#allocation7] ss:$8 sm:$0xf]
    %v44 = vld [vmem:[#allocation7] ss:$8 sm:$0xf0]
    %v45 = vor.u32 %v43, %v44
    %s46 = scalar_lea.vmem [#allocation7], 64
    %v47 = vld [vmem:[%s46] ss:$8 sm:$0xf]
    %v48 = vld [vmem:[%s46] ss:$8 sm:$0xf0]
    %v49 = vor.u32 %v47, %v48
    %s50 = sld [smem:[#allocation3]]
    %v51 = vstv %s50
    %v52 = vmul.f32 %v45, %v51
    %v53 = vmul.f32 %v49, %v51
    %s54 = scalar_lea.vmem [#allocation7], 1
    %v55 = vld [vmem:[%s54] ss:$8 sm:$0xf]
    %v56 = vld [vmem:[%s54] ss:$8 sm:$0xf0]
    %v57 = vor.u32 %v55, %v56
    %s58 = scalar_lea.vmem [#allocation7], 65
    %v59 = vld [vmem:[%s58] ss:$8 sm:$0xf]
    %v60 = vld [vmem:[%s58] ss:$8 sm:$0xf0]
    %v61 = vor.u32 %v59, %v60
    %s62 = sld [smem:[#allocation3 + $0x1]]
    %v63 = vstv %s62
    %v64 = vmul.f32 %v57, %v63
    %v65 = vmul.f32 %v61, %v63
    %v66 = vadd.f32 %v52, %v64
    %v67 = vadd.f32 %v53, %v65
    %s68 = scalar_lea.vmem [#allocation7], 2
    %v69 = vld [vmem:[%s68] ss:$8 sm:$0xf]
    %v70 = vld [vmem:[%s68] ss:$8 sm:$0xf0]
    %v71 = vor.u32 %v69, %v70
    %s72 = scalar_lea.vmem [#allocation7], 66
    %v73 = vld [vmem:[%s72] ss:$8 sm:$0xf]
    %v74 = vld [vmem:[%s72] ss:$8 sm:$0xf0]
    %v75 = vor.u32 %v73, %v74
    %s76 = sld [smem:[#allocation3 + $0x2]]
    %v77 = vstv %s76
    %v78 = vmul.f32 %v71, %v77
    %v79 = vmul.f32 %v75, %v77
    %v80 = vadd.f32 %v66, %v78
    %v81 = vadd.f32 %v67, %v79
    %s82 = scalar_lea.vmem [#allocation7], 3
    %v83 = vld [vmem:[%s82] ss:$8 sm:$0xf]
    %v84 = vld [vmem:[%s82] ss:$8 sm:$0xf0]
    %v85 = vor.u32 %v83, %v84
    %s86 = scalar_lea.vmem [#allocation7], 67
    %v87 = vld [vmem:[%s86] ss:$8 sm:$0xf]
    %v88 = vld [vmem:[%s86] ss:$8 sm:$0xf0]
    %v89 = vor.u32 %v87, %v88
    %s90 = sld [smem:[#allocation3 + $0x3]]
    %v91 = vstv %s90
    %v92 = vmul.f32 %v85, %v91
    %v93 = vmul.f32 %v89, %v91
    %v94 = vadd.f32 %v80, %v92
    %v95 = vadd.f32 %v81, %v93
    %s96 = scalar_lea.vmem [#allocation7], 4
    %v97 = vld [vmem:[%s96] ss:$8 sm:$0xf]
    %v98 = vld [vmem:[%s96] ss:$8 sm:$0xf0]
    %v99 = vor.u32 %v97, %v98
    %s100 = scalar_lea.vmem [#allocation7], 68
    %v101 = vld [vmem:[%s100] ss:$8 sm:$0xf]
    %v102 = vld [vmem:[%s100] ss:$8 sm:$0xf0]
    %v103 = vor.u32 %v101, %v102
    %s104 = sld [smem:[#allocation3 + $0x4]]
    %v105 = vstv %s104
    %v106 = vmul.f32 %v99, %v105
    %v107 = vmul.f32 %v103, %v105
    %v108 = vadd.f32 %v94, %v106
    %v109 = vadd.f32 %v95, %v107
    %s110 = scalar_lea.vmem [#allocation7], 5
    %v111 = vld [vmem:[%s110] ss:$8 sm:$0xf]
    %v112 = vld [vmem:[%s110] ss:$8 sm:$0xf0]
    %v113 = vor.u32 %v111, %v112
    %s114 = scalar_lea.vmem [#allocation7], 69
    %v115 = vld [vmem:[%s114] ss:$8 sm:$0xf]
    %v116 = vld [vmem:[%s114] ss:$8 sm:$0xf0]
    %v117 = vor.u32 %v115, %v116
    %s118 = sld [smem:[#allocation3 + $0x5]]
    %v119 = vstv %s118
    %v120 = vmul.f32 %v113, %v119
    %v121 = vmul.f32 %v117, %v119
    %v122 = vadd.f32 %v108, %v120
    %v123 = vadd.f32 %v109, %v121
    %s124 = scalar_lea.vmem [#allocation7], 6
    %v125 = vld [vmem:[%s124] ss:$8 sm:$0xf]
    %v126 = vld [vmem:[%s124] ss:$8 sm:$0xf0]
    %v127 = vor.u32 %v125, %v126
    %s128 = scalar_lea.vmem [#allocation7], 70
    %v129 = vld [vmem:[%s128] ss:$8 sm:$0xf]
    %v130 = vld [vmem:[%s128] ss:$8 sm:$0xf0]
    %v131 = vor.u32 %v129, %v130
    %s132 = sld [smem:[#allocation3 + $0x6]]
    %v133 = vstv %s132
    %v134 = vmul.f32 %v127, %v133
    %v135 = vmul.f32 %v131, %v133
    %v136 = vadd.f32 %v122, %v134
    %v137 = vadd.f32 %v123, %v135
    %s138 = sld [smem:[#allocation2]]
    %v139 = vstv %s138
    %v140 = vadd.f32 %v136, %v139
    %v141 = vadd.f32 %v137, %v139
    %v142 = vxor.u32 %v140, 2147483648
    %v143 = vxor.u32 %v141, 2147483648
    %v144 = vmul.f32 %v142, 1.442695
    %v145 = vpow.pop %v144
    %v146 = vmul.f32 %v143, 1.442695
    %v147 = vpow.pop %v146
    %v148 = vadd.f32 %v145, 1.0
    %v149 = vadd.f32 %v147, 1.0
    %v150 = vrcp.pop %v148
    %v151 = vmul.f32 %v148, %v150
    %v152 = vsub.f32 1.0, %v151
    %v153 = vmul.f32 %v150, %v152
    %v154 = vadd.f32 %v150, %v153
    %vm155 = vweird.f32 %v148
    %vm156 = vweird.f32 %v150
    %vm157 = vmor %vm155, %vm156
    %v158 = vsel %vm157, %v150, %v154
    %v159 = vand.u32 2147483647, %v148
    %vm160 = vcmp.eq.f32.partialorder %v159, 8.507059e+37
    %v161 = vand.u32 %v148, 2147483648
    %v162 = vor.u32 1.1754944e-38, %v161
    %v163 = vsel %vm160, %v162, %v158
    %v164 = vmul.f32 1.0, %v163
    %v165 = vrcp.pop %v149
    %v166 = vmul.f32 %v149, %v165
    %v167 = vsub.f32 1.0, %v166
    %v168 = vmul.f32 %v165, %v167
    %v169 = vadd.f32 %v165, %v168
    %vm170 = vweird.f32 %v149
    %vm171 = vweird.f32 %v165
    %vm172 = vmor %vm170, %vm171
    %v173 = vsel %vm172, %v165, %v169
    %v174 = vand.u32 2147483647, %v149
    %vm175 = vcmp.eq.f32.partialorder %v174, 8.507059e+37
    %v176 = vand.u32 %v149, 2147483648
    %v177 = vor.u32 1.1754944e-38, %v176
    %v178 = vsel %vm175, %v177, %v173
    %v179 = vmul.f32 1.0, %v178
    %180 = vst [vmem:[#allocation8] sm:$0xff] %v164
    %181 = vst [vmem:[#allocation8 + $0x8] sm:$0xff] %v179
    // Predicated region
    $region22: #{tpu_custom_call.1} parent=1 // pred_check
      _
    $region23: #{tpu_custom_call.1} parent=1 // pred_check_branch
      %183 = sbr.rel (0) target = $region25
    $region24: #{tpu_custom_call.1} parent=1 // pred_region
      %185 = vsyncadd [#allocation5], 0
      %s187 = sshll.u32 [#allocation8], 4
      %s188 = int_to_ptr.vmem [resolvable:$true] %s187
      %s189 = sshll.u32 %s3, 4
      %s190 = int_to_ptr.hbm [resolvable:$true] %s189
      %192 = dma.vmem_to_hbm [thread:$0]  %s188, 256, %s190, [#allocation5]
    $region25: #{tpu_custom_call.1} parent=1 // pred_fallthru
      _
    // Predicated region
    $region26: #{tpu_custom_call.1} parent=1 // pred_check
      _
    $region27: #{tpu_custom_call.1} parent=1 // pred_check_branch
      %194 = sbr.rel (0) target = $region29
    $region28: #{tpu_custom_call.1} parent=1 // pred_region
      %196 = dma.done [#allocation5], 256
    $region29: #{tpu_custom_call.1} parent=1 // pred_fallthru
      _
    %197 = vsyncpa [#allocation4], 1
    %198 = vsyncpa [#allocation5], 1
    %199 = vsyncpa [#allocation6], 1

</llo_original>
